<compile_context>
chip_gen: v7x
topology: tpu7x:2x2x1
jax: 0.10.0
libtpu: 0.0.40
codegen_flags: <defaults>
</compile_context>

<pallas_src>
import jax
import jax.numpy as jnp
from jax.experimental import pallas as pl
from jax.experimental.pallas import tpu as pltpu


def _spatial_embed_kernel(x_ref, w_ref, o_ref):
    # x_ref: (Mt, P)   w_ref: (P, D)   o_ref: (Mt, D)
    o_ref[...] = jnp.dot(
        x_ref[...], w_ref[...], preferred_element_type=jnp.float32
    ).astype(o_ref.dtype)


def spatial_embedding(SE, W):
    """SE: (B, S, P) float32;  W: (D, P) float32 (nn.Linear weight layout).

    Returns (B, 1, S, D), matching torch's SE.unsqueeze(1) -> Linear(P->D, bias=False).
    """
    B, S, P = SE.shape
    D = W.shape[0]
    M = B * S

    # Metadata-only reshape (SE is contiguous) and a one-time tiny transpose of W.
    x = SE.reshape(M, P)
    w_pd = W.T  # (P, D)

    # Single grid step when the whole problem fits comfortably; otherwise tile M.
    MAX_MT = 2048  # rows per step; multiple of 8, tiny VMEM footprint on all gens
    if M <= MAX_MT:
        mt = M          # full-dim block (satisfies the (8,128) rule via "equal full dim")
        grid = (1,)
        dim_sem = ("arbitrary",)   # single block: nothing to shard across cores
    else:
        mt = MAX_MT
        grid = (pl.cdiv(M, mt),)
        dim_sem = ("parallel",)    # independent M tiles -> megacore-friendly

    out = pl.pallas_call(
        _spatial_embed_kernel,
        out_shape=jax.ShapeDtypeStruct((M, D), SE.dtype),
        grid_spec=pltpu.PrefetchScalarGridSpec(
            num_scalar_prefetch=0,
            grid=grid,
            in_specs=[
                pl.BlockSpec((mt, P), lambda i: (i, 0)),
                # Full weight, resident across the grid (DMA'd once).
                pl.BlockSpec((P, D), lambda i: (0, 0)),
            ],
            out_specs=pl.BlockSpec((mt, D), lambda i: (i, 0)),
        ),
        compiler_params=pltpu.CompilerParams(
            dimension_semantics=dim_sem,
        ),
    )(x, w_pd)

    # Metadata-only reshape back to the torch output layout (B, 1, S, D).
    return out.reshape(B, 1, S, D)


if __name__ == "__main__":
    # Shapes consistent with the module: SE is (batch, 134, P), output hidden D.
    B, S, P, D = 2, 134, 8, 32

    key = jax.random.PRNGKey(0)
    k_se, k_w = jax.random.split(key)
    SE = jax.random.normal(k_se, (B, S, P), dtype=jnp.float32)
    # nn.Linear(P, D, bias=False) weight has shape (D, P).
    W = jax.random.normal(k_w, (D, P), dtype=jnp.float32) * 0.1

    out = spatial_embedding(SE, W)
    out = jax.block_until_ready(out)

    # Reference: unsqueeze(1) then x @ W^T
    ref = jnp.einsum("bsp,dp->bsd", SE, W)[:, None, :, :]
    assert out.shape == (B, 1, S, D)
    assert jnp.allclose(out, ref, atol=1e-5, rtol=1e-5)

    print("KERNEL_OK")
</pallas_src>

<mosaic_0001>
module attributes {stable_mosaic.version = 11 : i64} {
  func.func @_spatial_embed_kernel(%arg0: i32, %arg1: memref<268x8xf32, #tpu.memory_space<vmem>>, %arg2: memref<8x32xf32, #tpu.memory_space<vmem>>, %arg3: memref<268x32xf32, #tpu.memory_space<vmem>>) attributes {dimension_semantics = [#tpu.dimension_semantics<arbitrary>], iteration_bounds = array<i64: 1>, scalar_prefetch = 0 : i64, scratch_operands = 0 : i64, tpu.core_type = #tpu.core_type<tc>, window_params = [{transform_indices = @transform_0, window_bounds = array<i64: 268, 8>}, {pipeline_mode = #tpu.pipeline_mode<synchronous>, transform_indices = @transform_1, window_bounds = array<i64: 8, 32>}, {transform_indices = @transform_2, window_bounds = array<i64: 268, 32>}]} {
    %c0 = arith.constant 0 : index
    %c0_0 = arith.constant 0 : index
    %0 = vector.load %arg1[%c0, %c0_0] : memref<268x8xf32, #tpu.memory_space<vmem>>, vector<268x8xf32>
    %c0_1 = arith.constant 0 : index
    %c0_2 = arith.constant 0 : index
    %1 = vector.load %arg2[%c0_1, %c0_2] : memref<8x32xf32, #tpu.memory_space<vmem>>, vector<8x32xf32>
    %cst = arith.constant dense<0.000000e+00> : vector<268x32xf32>
    %2 = tpu.matmul %0, %1, %cst {dimension_numbers = #tpu.dot_dimension_numbers<[1], [0], [0], [1], [0, 0, 1, 1], [], []>} : vector<268x8xf32>, vector<8x32xf32>, vector<268x32xf32> -> vector<268x32xf32>
    %c0_3 = arith.constant 0 : index
    %c0_4 = arith.constant 0 : index
    %3 = vector.load %arg3[%c0_3, %c0_4] : memref<268x32xf32, #tpu.memory_space<vmem>>, vector<268x32xf32>
    tpu.vector_store %arg3[%c0_3, %c0_4], %2 {strides = array<i32>} : memref<268x32xf32, #tpu.memory_space<vmem>>, vector<268x32xf32>,
    return
  }
  func.func @transform_0(%arg0: i32) -> (i32, i32) {
    %c0_i32 = arith.constant 0 : i32
    %c0_i32_0 = arith.constant 0 : i32
    return %arg0, %c0_i32 : i32, i32
  }
  func.func @transform_1(%arg0: i32) -> (i32, i32) {
    %c0_i32 = arith.constant 0 : i32
    %c0_i32_0 = arith.constant 0 : i32
    %c0_i32_1 = arith.constant 0 : i32
    return %c0_i32, %c0_i32_0 : i32, i32
  }
  func.func @transform_2(%arg0: i32) -> (i32, i32) {
    %c0_i32 = arith.constant 0 : i32
    %c0_i32_0 = arith.constant 0 : i32
    return %arg0, %c0_i32 : i32, i32
  }
}

</mosaic_0001>

<llo_original>
// kernel: tpu_custom_call.1
$region0: #{tpu_custom_call.1}
  #allocation0 [shape = 'u32[]', space=smem, size = 0x4, offset = 0x4, fixed_abs, tag = 'smem constant byte address 0x4 - core index']
  #allocation1 [shape = 'u32[144,128]{1,0:T(1,128)}', space=vmem, size = 0x12000, scoped, tag = 'internal scratch']
  %s0 = inlined_call_operand.vmem [shape: f32[268,8], index: 0, kind: input, shape index: {}]
  %s1 = inlined_call_operand.vmem [shape: f32[8,32], index: 1, kind: input, shape index: {}]
  %s2 = inlined_call_operand.vmem [shape: f32[268,32], index: 2, kind: output, shape index: {}]
  %s3 = sld [smem:[#allocation0]]
  $region18: #{tpu_custom_call.1} parent=0
    _
  %s5 = ssub.s32 1, %s3
  %s6 = scalar_select 0, %s5, %s3
  // Predicated region
  $region2: #{tpu_custom_call.1} parent=0 // pred_check
    _
  $region3: #{tpu_custom_call.1} parent=0 // pred_check_branch
    %8 = sbr.rel (0) target = $region5
  $region4: #{tpu_custom_call.1} parent=0 // pred_region
    _
  $region5: #{tpu_custom_call.1} parent=0 // pred_fallthru
    _
  // Predicated region
  $region6: #{tpu_custom_call.1} parent=0 // pred_check
    _
  $region7: #{tpu_custom_call.1} parent=0 // pred_check_branch
    %10 = sbr.rel (0) target = $region9
  $region8: #{tpu_custom_call.1} parent=0 // pred_region
    _
  $region9: #{tpu_custom_call.1} parent=0 // pred_fallthru
    _
  %v11 = vld [vmem:[%s0] sm:$0xff]
  %v12 = vld [vmem:[%s0 + $0x8] sm:$0xff]
  %v13 = vld [vmem:[%s0 + $0x10] sm:$0xff]
  %v14 = vld [vmem:[%s0 + $0x18] sm:$0xff]
  %v15 = vld [vmem:[%s0 + $0x20] sm:$0xff]
  %v16 = vld [vmem:[%s0 + $0x28] sm:$0xff]
  %v17 = vld [vmem:[%s0 + $0x30] sm:$0xff]
  %v18 = vld [vmem:[%s0 + $0x38] sm:$0xff]
  %v19 = vld [vmem:[%s0 + $0x40] sm:$0xff]
  %v20 = vld [vmem:[%s0 + $0x48] sm:$0xff]
  %v21 = vld [vmem:[%s0 + $0x50] sm:$0xff]
  %v22 = vld [vmem:[%s0 + $0x58] sm:$0xff]
  %v23 = vld [vmem:[%s0 + $0x60] sm:$0xff]
  %v24 = vld [vmem:[%s0 + $0x68] sm:$0xff]
  %v25 = vld [vmem:[%s0 + $0x70] sm:$0xff]
  %v26 = vld [vmem:[%s0 + $0x78] sm:$0xff]
  %v27 = vld [vmem:[%s0 + $0x80] sm:$0xff]
  %v28 = vld [vmem:[%s0 + $0x88] sm:$0xff]
  %v29 = vld [vmem:[%s0 + $0x90] sm:$0xff]
  %v30 = vld [vmem:[%s0 + $0x98] sm:$0xff]
  %v31 = vld [vmem:[%s0 + $0xa0] sm:$0xff]
  %v32 = vld [vmem:[%s0 + $0xa8] sm:$0xff]
  %v33 = vld [vmem:[%s0 + $0xb0] sm:$0xff]
  %v34 = vld [vmem:[%s0 + $0xb8] sm:$0xff]
  %v35 = vld [vmem:[%s0 + $0xc0] sm:$0xff]
  %v36 = vld [vmem:[%s0 + $0xc8] sm:$0xff]
  %v37 = vld [vmem:[%s0 + $0xd0] sm:$0xff]
  %v38 = vld [vmem:[%s0 + $0xd8] sm:$0xff]
  %v39 = vld [vmem:[%s0 + $0xe0] sm:$0xff]
  %v40 = vld [vmem:[%s0 + $0xe8] sm:$0xff]
  %v41 = vld [vmem:[%s0 + $0xf0] sm:$0xff]
  %v42 = vld [vmem:[%s0 + $0xf8] sm:$0xff]
  %v43 = vld [vmem:[%s0 + $0x100] sm:$0xff]
  %v44 = vld [vmem:[%s0 + $0x108] sm:$0xf]
  %v45 = vld [vmem:[%s1] sm:$0xff]
  %vm46 = vcmask 64512
  %v48 = vsel %vm46, %v11, 0
  %v51 = vsel %vm46, %v12, 0
  %v54 = vsel %vm46, %v13, 0
  %v57 = vsel %vm46, %v14, 0
  %v60 = vsel %vm46, %v15, 0
  %v63 = vsel %vm46, %v16, 0
  %v66 = vsel %vm46, %v17, 0
  %v69 = vsel %vm46, %v18, 0
  %v72 = vsel %vm46, %v19, 0
  %v75 = vsel %vm46, %v20, 0
  %v78 = vsel %vm46, %v21, 0
  %v81 = vsel %vm46, %v22, 0
  %v84 = vsel %vm46, %v23, 0
  %v87 = vsel %vm46, %v24, 0
  %v90 = vsel %vm46, %v25, 0
  %v93 = vsel %vm46, %v26, 0
  %v96 = vsel %vm46, %v27, 0
  %v99 = vsel %vm46, %v28, 0
  %v102 = vsel %vm46, %v29, 0
  %v105 = vsel %vm46, %v30, 0
  %v108 = vsel %vm46, %v31, 0
  %v111 = vsel %vm46, %v32, 0
  %v114 = vsel %vm46, %v33, 0
  %v117 = vsel %vm46, %v34, 0
  %v120 = vsel %vm46, %v35, 0
  %v123 = vsel %vm46, %v36, 0
  %v126 = vsel %vm46, %v37, 0
  %v129 = vsel %vm46, %v38, 0
  %v132 = vsel %vm46, %v39, 0
  %v135 = vsel %vm46, %v40, 0
  %v138 = vsel %vm46, %v41, 0
  %v141 = vsel %vm46, %v42, 0
  %v144 = vsel %vm46, %v43, 0
  %v147 = vsel %vm46, %v44, 0
  %149 = vmatprep.subr.mxu0 0.0
  %150 = vmatpush1.msra.mxu0 %v45
  %151 = vmatprep.subr.mxu0 0.0
  %152 = vmatpush1.msra.mxu0 0.0
  %153 = vmatprep.subr.mxu0 0.0
  %154 = vmatpush1.msra.mxu0 0.0
  %155 = vmatprep.subr.mxu0 0.0
  %156 = vmatpush1.msra.mxu0 0.0
  %157 = vmatprep.subr.mxu0 0.0
  %158 = vmatpush1.msra.mxu0 0.0
  %159 = vmatprep.subr.mxu0 0.0
  %160 = vmatpush1.msra.mxu0 0.0
  %161 = vmatprep.subr.mxu0 0.0
  %162 = vmatpush1.msra.mxu0 0.0
  %163 = vmatprep.subr.mxu0 0.0
  %164 = vmatpush1.msra.mxu0 0.0
  %165 = vmatprep.subr.mxu0 0.0
  %166 = vmatpush1.msra.mxu0 0.0
  %167 = vmatprep.subr.mxu0 0.0
  %168 = vmatpush1.msra.mxu0 0.0
  %169 = vmatprep.subr.mxu0 0.0
  %170 = vmatpush1.msra.mxu0 0.0
  %171 = vmatprep.subr.mxu0 0.0
  %172 = vmatpush1.msra.mxu0 0.0
  %173 = vmatprep.subr.mxu0 0.0
  %174 = vmatpush1.msra.mxu0 0.0
  %175 = vmatprep.subr.mxu0 0.0
  %176 = vmatpush1.msra.mxu0 0.0
  %177 = vmatprep.subr.mxu0 0.0
  %178 = vmatpush1.msra.mxu0 0.0
  %179 = vmatprep.subr.mxu0 0.0
  %180 = vmatpush1.msra.mxu0 0.0
  %181 = vmatprep.subr.mxu0 0.0
  %182 = vmatpush1.msra.mxu0 0.0
  %183 = vmatprep.subr.mxu0 0.0
  %184 = vmatpush1.msra.mxu0 0.0
  %185 = vmatprep.subr.mxu0 0.0
  %186 = vmatpush1.msra.mxu0 0.0
  %187 = vmatprep.subr.mxu0 0.0
  %188 = vmatpush1.msra.mxu0 0.0
  %189 = vmatprep.subr.mxu0 0.0
  %190 = vmatpush1.msra.mxu0 0.0
  %191 = vmatprep.subr.mxu0 0.0
  %192 = vmatpush1.msra.mxu0 0.0
  %193 = vmatprep.subr.mxu0 0.0
  %194 = vmatpush1.msra.mxu0 0.0
  %195 = vmatprep.subr.mxu0 0.0
  %196 = vmatpush1.msra.mxu0 0.0
  %197 = vmatprep.subr.mxu0 0.0
  %198 = vmatpush1.msra.mxu0 0.0
  %199 = vmatprep.subr.mxu0 0.0
  %200 = vmatpush1.msra.mxu0 0.0
  %201 = vmatprep.subr.mxu0 0.0
  %202 = vmatpush1.msra.mxu0 0.0
  %203 = vmatprep.subr.mxu0 0.0
  %204 = vmatpush1.msra.mxu0 0.0
  %205 = vmatprep.subr.mxu0 0.0
  %206 = vmatpush1.msra.mxu0 0.0
  %207 = vmatprep.subr.mxu0 0.0
  %208 = vmatpush1.msra.mxu0 0.0
  %209 = vmatprep.subr.mxu0 0.0
  %210 = vmatpush1.msra.mxu0 0.0
  %211 = vmatprep.subr.mxu0 0.0
  %212 = vmatpush1.msra.mxu0 0.0
  %213 = vmatprep.mubr.f32.mxu0 0.0
  %214 = vmatmul.mubr.f32.gmra.mrb[0].mxu0 %v48
  %v215 = vpop.f32.mrb[0].mxu0
  %v216 = vadd.f32 0.0, %v215
  %v217 = vpop.f32.mrb[0].mxu0
  %218 = vmatprep.mubr.f32.mxu0 0.0
  %219 = vmatmul.mubr.f32.gmra.mrb[0].mxu0 %v51
  %v220 = vpop.f32.mrb[0].mxu0
  %v221 = vadd.f32 0.0, %v220
  %v222 = vpop.f32.mrb[0].mxu0
  %223 = vmatprep.mubr.f32.mxu0 0.0
  %224 = vmatmul.mubr.f32.gmra.mrb[0].mxu0 %v54
  %v225 = vpop.f32.mrb[0].mxu0
  %v226 = vadd.f32 0.0, %v225
  %v227 = vpop.f32.mrb[0].mxu0
  %228 = vmatprep.mubr.f32.mxu0 0.0
  %229 = vmatmul.mubr.f32.gmra.mrb[0].mxu0 %v57
  %v230 = vpop.f32.mrb[0].mxu0
  %v231 = vadd.f32 0.0, %v230
  %v232 = vpop.f32.mrb[0].mxu0
  %233 = vmatprep.mubr.f32.mxu0 0.0
  %234 = vmatmul.mubr.f32.gmra.mrb[0].mxu0 %v60
  %v235 = vpop.f32.mrb[0].mxu0
  %v236 = vadd.f32 0.0, %v235
  %v237 = vpop.f32.mrb[0].mxu0
  %238 = vmatprep.mubr.f32.mxu0 0.0
  %239 = vmatmul.mubr.f32.gmra.mrb[0].mxu0 %v63
  %v240 = vpop.f32.mrb[0].mxu0
  %v241 = vadd.f32 0.0, %v240
  %v242 = vpop.f32.mrb[0].mxu0
  %243 = vmatprep.mubr.f32.mxu0 0.0
  %244 = vmatmul.mubr.f32.gmra.mrb[0].mxu0 %v66
  %v245 = vpop.f32.mrb[0].mxu0
  %v246 = vadd.f32 0.0, %v245
  %v247 = vpop.f32.mrb[0].mxu0
  %248 = vmatprep.mubr.f32.mxu0 0.0
  %249 = vmatmul.mubr.f32.gmra.mrb[0].mxu0 %v69
  %v250 = vpop.f32.mrb[0].mxu0
  %v251 = vadd.f32 0.0, %v250
  %v252 = vpop.f32.mrb[0].mxu0
  %253 = vmatprep.mubr.f32.mxu0 0.0
  %254 = vmatmul.mubr.f32.gmra.mrb[0].mxu0 %v72
  %v255 = vpop.f32.mrb[0].mxu0
  %v256 = vadd.f32 0.0, %v255
  %v257 = vpop.f32.mrb[0].mxu0
  %258 = vmatprep.mubr.f32.mxu0 0.0
  %259 = vmatmul.mubr.f32.gmra.mrb[0].mxu0 %v75
  %v260 = vpop.f32.mrb[0].mxu0
  %v261 = vadd.f32 0.0, %v260
  %v262 = vpop.f32.mrb[0].mxu0
  %263 = vmatprep.mubr.f32.mxu0 0.0
  %264 = vmatmul.mubr.f32.gmra.mrb[0].mxu0 %v78
  %v265 = vpop.f32.mrb[0].mxu0
  %v266 = vadd.f32 0.0, %v265
  %v267 = vpop.f32.mrb[0].mxu0
  %268 = vmatprep.mubr.f32.mxu0 0.0
  %269 = vmatmul.mubr.f32.gmra.mrb[0].mxu0 %v81
  %v270 = vpop.f32.mrb[0].mxu0
  %v271 = vadd.f32 0.0, %v270
  %v272 = vpop.f32.mrb[0].mxu0
  %273 = vmatprep.mubr.f32.mxu0 0.0
  %274 = vmatmul.mubr.f32.gmra.mrb[0].mxu0 %v84
  %v275 = vpop.f32.mrb[0].mxu0
  %v276 = vadd.f32 0.0, %v275
  %v277 = vpop.f32.mrb[0].mxu0
  %278 = vmatprep.mubr.f32.mxu0 0.0
  %279 = vmatmul.mubr.f32.gmra.mrb[0].mxu0 %v87
  %v280 = vpop.f32.mrb[0].mxu0
  %v281 = vadd.f32 0.0, %v280
  %v282 = vpop.f32.mrb[0].mxu0
  %283 = vmatprep.mubr.f32.mxu0 0.0
  %284 = vmatmul.mubr.f32.gmra.mrb[0].mxu0 %v90
  %v285 = vpop.f32.mrb[0].mxu0
  %v286 = vadd.f32 0.0, %v285
  %v287 = vpop.f32.mrb[0].mxu0
  %288 = vmatprep.mubr.f32.mxu0 0.0
  %289 = vmatmul.mubr.f32.gmra.mrb[0].mxu0 %v93
  %v290 = vpop.f32.mrb[0].mxu0
  %v291 = vadd.f32 0.0, %v290
  %v292 = vpop.f32.mrb[0].mxu0
  %293 = vmatprep.mubr.f32.mxu0 0.0
  %294 = vmatmul.mubr.f32.gmra.mrb[0].mxu0 %v96
  %v295 = vpop.f32.mrb[0].mxu0
  %v296 = vadd.f32 0.0, %v295
  %v297 = vpop.f32.mrb[0].mxu0
  %298 = vmatprep.mubr.f32.mxu0 0.0
  %299 = vmatmul.mubr.f32.gmra.mrb[0].mxu0 %v99
  %v300 = vpop.f32.mrb[0].mxu0
  %v301 = vadd.f32 0.0, %v300
  %v302 = vpop.f32.mrb[0].mxu0
  %303 = vmatprep.mubr.f32.mxu0 0.0
  %304 = vmatmul.mubr.f32.gmra.mrb[0].mxu0 %v102
  %v305 = vpop.f32.mrb[0].mxu0
  %v306 = vadd.f32 0.0, %v305
  %v307 = vpop.f32.mrb[0].mxu0
  %308 = vmatprep.mubr.f32.mxu0 0.0
  %309 = vmatmul.mubr.f32.gmra.mrb[0].mxu0 %v105
  %v310 = vpop.f32.mrb[0].mxu0
  %v311 = vadd.f32 0.0, %v310
  %v312 = vpop.f32.mrb[0].mxu0
  %313 = vmatprep.mubr.f32.mxu0 0.0
  %314 = vmatmul.mubr.f32.gmra.mrb[0].mxu0 %v108
  %v315 = vpop.f32.mrb[0].mxu0
  %v316 = vadd.f32 0.0, %v315
  %v317 = vpop.f32.mrb[0].mxu0
  %318 = vmatprep.mubr.f32.mxu0 0.0
  %319 = vmatmul.mubr.f32.gmra.mrb[0].mxu0 %v111
  %v320 = vpop.f32.mrb[0].mxu0
  %v321 = vadd.f32 0.0, %v320
  %v322 = vpop.f32.mrb[0].mxu0
  %323 = vmatprep.mubr.f32.mxu0 0.0
  %324 = vmatmul.mubr.f32.gmra.mrb[0].mxu0 %v114
  %v325 = vpop.f32.mrb[0].mxu0
  %v326 = vadd.f32 0.0, %v325
  %v327 = vpop.f32.mrb[0].mxu0
  %328 = vmatprep.mubr.f32.mxu0 0.0
  %329 = vmatmul.mubr.f32.gmra.mrb[0].mxu0 %v117
  %v330 = vpop.f32.mrb[0].mxu0
  %v331 = vadd.f32 0.0, %v330
  %v332 = vpop.f32.mrb[0].mxu0
  %333 = vmatprep.mubr.f32.mxu0 0.0
  %334 = vmatmul.mubr.f32.gmra.mrb[0].mxu0 %v120
  %v335 = vpop.f32.mrb[0].mxu0
  %v336 = vadd.f32 0.0, %v335
  %v337 = vpop.f32.mrb[0].mxu0
  %338 = vmatprep.mubr.f32.mxu0 0.0
  %339 = vmatmul.mubr.f32.gmra.mrb[0].mxu0 %v123
  %v340 = vpop.f32.mrb[0].mxu0
  %v341 = vadd.f32 0.0, %v340
  %v342 = vpop.f32.mrb[0].mxu0
  %343 = vmatprep.mubr.f32.mxu0 0.0
  %344 = vmatmul.mubr.f32.gmra.mrb[0].mxu0 %v126
  %v345 = vpop.f32.mrb[0].mxu0
  %v346 = vadd.f32 0.0, %v345
  %v347 = vpop.f32.mrb[0].mxu0
  %348 = vmatprep.mubr.f32.mxu0 0.0
  %349 = vmatmul.mubr.f32.gmra.mrb[0].mxu0 %v129
  %v350 = vpop.f32.mrb[0].mxu0
  %v351 = vadd.f32 0.0, %v350
  %v352 = vpop.f32.mrb[0].mxu0
  %353 = vmatprep.mubr.f32.mxu0 0.0
  %354 = vmatmul.mubr.f32.gmra.mrb[0].mxu0 %v132
  %v355 = vpop.f32.mrb[0].mxu0
  %v356 = vadd.f32 0.0, %v355
  %v357 = vpop.f32.mrb[0].mxu0
  %358 = vmatprep.mubr.f32.mxu0 0.0
  %359 = vmatmul.mubr.f32.gmra.mrb[0].mxu0 %v135
  %v360 = vpop.f32.mrb[0].mxu0
  %v361 = vadd.f32 0.0, %v360
  %v362 = vpop.f32.mrb[0].mxu0
  %363 = vmatprep.mubr.f32.mxu0 0.0
  %364 = vmatmul.mubr.f32.gmra.mrb[0].mxu0 %v138
  %v365 = vpop.f32.mrb[0].mxu0
  %v366 = vadd.f32 0.0, %v365
  %v367 = vpop.f32.mrb[0].mxu0
  %368 = vmatprep.mubr.f32.mxu0 0.0
  %369 = vmatmul.mubr.f32.gmra.mrb[0].mxu0 %v141
  %v370 = vpop.f32.mrb[0].mxu0
  %v371 = vadd.f32 0.0, %v370
  %v372 = vpop.f32.mrb[0].mxu0
  %373 = vmatprep.mubr.f32.mxu0 0.0
  %374 = vmatmul.mubr.f32.gmra.mrb[0].mxu0 %v144
  %v375 = vpop.f32.mrb[0].mxu0
  %v376 = vadd.f32 0.0, %v375
  %v377 = vpop.f32.mrb[0].mxu0
  %378 = vmatprep.mubr.f32.mxu0 0.0
  %379 = vmatmul.mubr.f32.gmra.mrb[0].mxu0 %v147
  %v380 = vpop.f32.mrb[0].mxu0
  %v381 = vadd.f32 0.0, %v380
  %v382 = vpop.f32.mrb[0].mxu0
  %383 = vdwg.mxu0
  %vm384 = vcmask 261120
  %385 = vst.msk [vmem:[%s2] sm:$0xff] %vm384, %v216
  %386 = vst.msk [vmem:[%s2 + $0x8] sm:$0xff] %vm384, %v221
  %387 = vst.msk [vmem:[%s2 + $0x10] sm:$0xff] %vm384, %v226
  %388 = vst.msk [vmem:[%s2 + $0x18] sm:$0xff] %vm384, %v231
  %389 = vst.msk [vmem:[%s2 + $0x20] sm:$0xff] %vm384, %v236
  %390 = vst.msk [vmem:[%s2 + $0x28] sm:$0xff] %vm384, %v241
  %391 = vst.msk [vmem:[%s2 + $0x30] sm:$0xff] %vm384, %v246
  %392 = vst.msk [vmem:[%s2 + $0x38] sm:$0xff] %vm384, %v251
  %393 = vst.msk [vmem:[%s2 + $0x40] sm:$0xff] %vm384, %v256
  %394 = vst.msk [vmem:[%s2 + $0x48] sm:$0xff] %vm384, %v261
  %395 = vst.msk [vmem:[%s2 + $0x50] sm:$0xff] %vm384, %v266
  %396 = vst.msk [vmem:[%s2 + $0x58] sm:$0xff] %vm384, %v271
  %397 = vst.msk [vmem:[%s2 + $0x60] sm:$0xff] %vm384, %v276
  %398 = vst.msk [vmem:[%s2 + $0x68] sm:$0xff] %vm384, %v281
  %399 = vst.msk [vmem:[%s2 + $0x70] sm:$0xff] %vm384, %v286
  %400 = vst.msk [vmem:[%s2 + $0x78] sm:$0xff] %vm384, %v291
  %401 = vst.msk [vmem:[%s2 + $0x80] sm:$0xff] %vm384, %v296
  %402 = vst.msk [vmem:[%s2 + $0x88] sm:$0xff] %vm384, %v301
  %403 = vst.msk [vmem:[%s2 + $0x90] sm:$0xff] %vm384, %v306
  %404 = vst.msk [vmem:[%s2 + $0x98] sm:$0xff] %vm384, %v311
  %405 = vst.msk [vmem:[%s2 + $0xa0] sm:$0xff] %vm384, %v316
  %406 = vst.msk [vmem:[%s2 + $0xa8] sm:$0xff] %vm384, %v321
  %407 = vst.msk [vmem:[%s2 + $0xb0] sm:$0xff] %vm384, %v326
  %408 = vst.msk [vmem:[%s2 + $0xb8] sm:$0xff] %vm384, %v331
  %409 = vst.msk [vmem:[%s2 + $0xc0] sm:$0xff] %vm384, %v336
  %410 = vst.msk [vmem:[%s2 + $0xc8] sm:$0xff] %vm384, %v341
  %411 = vst.msk [vmem:[%s2 + $0xd0] sm:$0xff] %vm384, %v346
  %412 = vst.msk [vmem:[%s2 + $0xd8] sm:$0xff] %vm384, %v351
  %413 = vst.msk [vmem:[%s2 + $0xe0] sm:$0xff] %vm384, %v356
  %414 = vst.msk [vmem:[%s2 + $0xe8] sm:$0xff] %vm384, %v361
  %415 = vst.msk [vmem:[%s2 + $0xf0] sm:$0xff] %vm384, %v366
  %416 = vst.msk [vmem:[%s2 + $0xf8] sm:$0xff] %vm384, %v371
  %417 = vst.msk [vmem:[%s2 + $0x100] sm:$0xff] %vm384, %v376
  %vm418 = vcmask 257024
  %419 = vst.msk [vmem:[%s2 + $0x108] sm:$0xf] %vm418, %v381
  // Predicated region
  $region10: #{tpu_custom_call.1} parent=0 // pred_check
    _
  $region11: #{tpu_custom_call.1} parent=0 // pred_check_branch
    %421 = sbr.rel (0) target = $region13
  $region12: #{tpu_custom_call.1} parent=0 // pred_region
    _
  $region13: #{tpu_custom_call.1} parent=0 // pred_fallthru
    _
  // Predicated region
  $region14: #{tpu_custom_call.1} parent=0 // pred_check
    _
  $region15: #{tpu_custom_call.1} parent=0 // pred_check_branch
    %423 = sbr.rel (0) target = $region17
  $region16: #{tpu_custom_call.1} parent=0 // pred_region
    _
  $region17: #{tpu_custom_call.1} parent=0 // pred_fallthru
    _

</llo_original>
